<compile_context>
chip_gen: v7x
topology: tpu7x:2x2x1
jax: 0.10.0
libtpu: 0.0.40
codegen_flags: <defaults>
</compile_context>

<pallas_src>
import jax
import jax.numpy as jnp
from jax.experimental import pallas as pl
from jax.experimental.pallas import tpu as pltpu


def _make_encoder_kernel(latent):
    """Kernel factory; `latent` (static) marks the mu | log_sigma^2 lane split."""

    def kernel(x_ref, w1_ref, b1_ref, w2_ref, b2_ref, out_ref):
        # fc1 + tanh : (TB, D) @ (D, H) + (1, H)  — f32 accumulate, f32 tanh (EUP)
        h = jnp.tanh(
            jnp.dot(x_ref[...], w1_ref[...], preferred_element_type=jnp.float32)
            + b1_ref[...]
        )
        # fused fc2 : (TB, H) @ (H, 2L) + (1, 2L)  — one MXU pass for mu & log_sigma^2
        h = h.astype(w2_ref.dtype)  # keep bf16-native MXU path when streaming bf16
        z = (
            jnp.dot(h, w2_ref[...], preferred_element_type=jnp.float32)
            + b2_ref[...]
        )
        # exp only on the sigma half (lanes >= latent); mu half passes through.
        col = jax.lax.broadcasted_iota(jnp.int32, z.shape, dimension=1)
        out_ref[...] = jnp.where(col < latent, z, jnp.exp(z)).astype(out_ref.dtype)

    return kernel


def _pick_batch_tile(B, D, bytes_per_elem, max_tile=1024,
                     vmem_budget=12 * 1024 * 1024):
    """Batch tile: large (amortize ~0.35us/step) but VMEM-safe on v5e (16 MiB scoped).

    The double-buffered x tile (2 * TB * D * bytes) is kept under a conservative
    budget; weights, biases and the (TB, 2L) output buffers use the remainder.
    """
    cap = max(8, vmem_budget // (2 * D * bytes_per_elem))
    tb = min(max_tile, cap)
    tb = max(8, (tb // 8) * 8)          # sublane-aligned
    if B <= tb:
        return B                        # single full block (block dim == array dim)
    return tb


def encoder_forward(x, w1, b1, w2_mu, b2_mu, w2_sigma, b2_sigma,
                    *, compute_dtype=jnp.float32, max_batch_tile=1024):
    """Fused Encoder forward as a single Pallas TPU kernel.

    x        : (B, data_dim)        f32
    w1       : (data_dim, hidden)   f32     b1       : (1, hidden)  f32
    w2_mu    : (hidden, latent)     f32     b2_mu    : (1, latent)  f32
    w2_sigma : (hidden, latent)     f32     b2_sigma : (1, latent)  f32
    compute_dtype : dtype for the streamed x / weight operands (f32 or bf16);
                    accumulation, bias add, tanh, exp and outputs are always f32.
    returns  : (mu, sigma_square), each (B, latent) f32
    """
    B, D = x.shape
    H = w1.shape[1]
    L = w2_mu.shape[1]

    # Fuse the two fc2 heads into one (H, 2L) GEMM: [mu | log_sigma^2].
    w2 = jnp.concatenate([w2_mu, w2_sigma], axis=1)          # (H, 2L)
    b2 = jnp.concatenate([b2_mu, b2_sigma], axis=1)          # (1, 2L)

    # Streamed operands optionally bf16 (halves HBM reads); biases stay f32.
    xc = x.astype(compute_dtype)
    w1c = w1.astype(compute_dtype)
    w2c = w2.astype(compute_dtype)
    b1c = b1.astype(jnp.float32)
    b2c = b2.astype(jnp.float32)

    bpe = jnp.dtype(compute_dtype).itemsize
    TB = _pick_batch_tile(B, D, bpe, max_tile=max_batch_tile)
    grid = (pl.cdiv(B, TB),)            # partial last tile handled by Pallas

    # Weights / biases: constant index maps -> VMEM-resident across the grid.
    def resident(a):
        return pl.BlockSpec(a.shape, lambda i: (0,) * a.ndim)

    cost = pl.CostEstimate(
        flops=2 * B * H * (D + 2 * L),
        transcendentals=B * (H + 2 * L),               # tanh + (masked) exp
        bytes_accessed=(B * D + D * H + H * 2 * L) * bpe
                       + 4 * (H + 2 * L + B * 2 * L),
    )

    fused_out = pl.pallas_call(
        _make_encoder_kernel(L),
        out_shape=jax.ShapeDtypeStruct((B, 2 * L), jnp.float32),
        grid=grid,
        in_specs=[
            pl.BlockSpec((TB, D), lambda i: (i, 0)),   # x: streamed over batch
            resident(w1c),
            resident(b1c),
            resident(w2c),
            resident(b2c),
        ],
        out_specs=pl.BlockSpec((TB, 2 * L), lambda i: (i, 0)),
        compiler_params=pltpu.CompilerParams(
            dimension_semantics=("parallel",),         # shard batch across TCs (v7x)
        ),
        cost_estimate=cost,
    )(xc, w1c, b1c, w2c, b2c)

    mu = fused_out[:, :L]
    sigma_square = fused_out[:, L:]
    return mu, sigma_square


def init_encoder_params(key, latent_dimension, hidden_units, data_dimension):
    """Deterministic init mimicking nn.Linear's uniform(-k, k), k = 1/sqrt(fan_in)."""
    keys = jax.random.split(key, 6)
    bound1 = 1.0 / jnp.sqrt(data_dimension)
    bound2 = 1.0 / jnp.sqrt(hidden_units)
    w1 = jax.random.uniform(keys[0], (data_dimension, hidden_units),
                            minval=-bound1, maxval=bound1, dtype=jnp.float32)
    b1 = jax.random.uniform(keys[1], (1, hidden_units),
                            minval=-bound1, maxval=bound1, dtype=jnp.float32)
    w2_mu = jax.random.uniform(keys[2], (hidden_units, latent_dimension),
                               minval=-bound2, maxval=bound2, dtype=jnp.float32)
    b2_mu = jax.random.uniform(keys[3], (1, latent_dimension),
                               minval=-bound2, maxval=bound2, dtype=jnp.float32)
    w2_sigma = jax.random.uniform(keys[4], (hidden_units, latent_dimension),
                                  minval=-bound2, maxval=bound2, dtype=jnp.float32)
    b2_sigma = jax.random.uniform(keys[5], (1, latent_dimension),
                                  minval=-bound2, maxval=bound2, dtype=jnp.float32)
    return w1, b1, w2_mu, b2_mu, w2_sigma, b2_sigma


def encoder_reference(x, w1, b1, w2_mu, b2_mu, w2_sigma, b2_sigma):
    """Pure-JAX reference matching the PyTorch Encoder.forward (f32)."""
    hidden = jnp.tanh(x @ w1 + b1)
    mu = hidden @ w2_mu + b2_mu
    sigma_square = jnp.exp(hidden @ w2_sigma + b2_sigma)
    return mu, sigma_square


if __name__ == "__main__":
    # Small shapes consistent with a VAE encoder.
    batch = 8
    data_dimension = 128
    hidden_units = 32
    latent_dimension = 8

    key = jax.random.PRNGKey(0)
    kx, kp = jax.random.split(key)

    x = jax.random.normal(kx, (batch, data_dimension), dtype=jnp.float32)
    params = init_encoder_params(kp, latent_dimension, hidden_units, data_dimension)
    mu_ref, sig_ref = encoder_reference(x, *params)

    # f32 path: bit-for-bit-ish vs reference.
    mu, sigma_square = encoder_forward(x, *params, compute_dtype=jnp.float32)
    mu = jax.block_until_ready(mu)
    sigma_square = jax.block_until_ready(sigma_square)
    assert mu.shape == (batch, latent_dimension)
    assert sigma_square.shape == (batch, latent_dimension)
    assert jnp.allclose(mu, mu_ref, atol=1e-5, rtol=1e-5), "mu mismatch (f32)"
    assert jnp.allclose(sigma_square, sig_ref, atol=1e-5, rtol=1e-5), \
        "sigma_square mismatch (f32)"

    # bf16-streamed path (halves HBM reads for the x / weight streams).
    mu_b, sig_b = encoder_forward(x, *params, compute_dtype=jnp.bfloat16)
    mu_b = jax.block_until_ready(mu_b)
    sig_b = jax.block_until_ready(sig_b)
    assert jnp.allclose(mu_b, mu_ref, atol=5e-2, rtol=5e-2), "mu mismatch (bf16)"
    assert jnp.allclose(sig_b, sig_ref, atol=5e-2, rtol=5e-2), \
        "sigma_square mismatch (bf16)"

    print("KERNEL_OK")
</pallas_src>

<mosaic_0001>
module attributes {stable_mosaic.version = 11 : i64} {
  func.func @kernel(%arg0: i32, %arg1: memref<8x128xf32, #tpu.memory_space<vmem>>, %arg2: memref<128x32xf32, #tpu.memory_space<vmem>>, %arg3: memref<1x32xf32, #tpu.memory_space<vmem>>, %arg4: memref<32x16xf32, #tpu.memory_space<vmem>>, %arg5: memref<1x16xf32, #tpu.memory_space<vmem>>, %arg6: memref<8x16xf32, #tpu.memory_space<vmem>>) attributes {dimension_semantics = [#tpu.dimension_semantics<parallel>], iteration_bounds = array<i64: 1>, scalar_prefetch = 0 : i64, scratch_operands = 0 : i64, tpu.core_type = #tpu.core_type<tc>, window_params = [{transform_indices = @transform_0, window_bounds = array<i64: 8, 128>}, {pipeline_mode = #tpu.pipeline_mode<synchronous>, transform_indices = @transform_1, window_bounds = array<i64: 128, 32>}, {pipeline_mode = #tpu.pipeline_mode<synchronous>, transform_indices = @transform_2, window_bounds = array<i64: 1, 32>}, {pipeline_mode = #tpu.pipeline_mode<synchronous>, transform_indices = @transform_3, window_bounds = array<i64: 32, 16>}, {pipeline_mode = #tpu.pipeline_mode<synchronous>, transform_indices = @transform_4, window_bounds = array<i64: 1, 16>}, {transform_indices = @transform_5, window_bounds = array<i64: 8, 16>}]} {
    %c0 = arith.constant 0 : index
    %c0_0 = arith.constant 0 : index
    %0 = vector.load %arg1[%c0, %c0_0] : memref<8x128xf32, #tpu.memory_space<vmem>>, vector<8x128xf32>
    %c0_1 = arith.constant 0 : index
    %c0_2 = arith.constant 0 : index
    %1 = vector.load %arg2[%c0_1, %c0_2] : memref<128x32xf32, #tpu.memory_space<vmem>>, vector<128x32xf32>
    %cst = arith.constant dense<0.000000e+00> : vector<8x32xf32>
    %2 = tpu.matmul %0, %1, %cst {dimension_numbers = #tpu.dot_dimension_numbers<[1], [0], [0], [1], [0, 0, 1, 1], [], []>} : vector<8x128xf32>, vector<128x32xf32>, vector<8x32xf32> -> vector<8x32xf32>
    %c0_3 = arith.constant 0 : index
    %c0_4 = arith.constant 0 : index
    %3 = vector.load %arg3[%c0_3, %c0_4] : memref<1x32xf32, #tpu.memory_space<vmem>>, vector<1x32xf32>
    %4 = vector.broadcast %3 : vector<1x32xf32> to vector<8x32xf32>
    %5 = arith.addf %2, %4 : vector<8x32xf32>
    %6 = math.tanh %5 : vector<8x32xf32>
    %c0_5 = arith.constant 0 : index
    %c0_6 = arith.constant 0 : index
    %7 = vector.load %arg4[%c0_5, %c0_6] : memref<32x16xf32, #tpu.memory_space<vmem>>, vector<32x16xf32>
    %cst_7 = arith.constant dense<0.000000e+00> : vector<8x16xf32>
    %8 = tpu.matmul %6, %7, %cst_7 {dimension_numbers = #tpu.dot_dimension_numbers<[1], [0], [0], [1], [0, 0, 1, 1], [], []>} : vector<8x32xf32>, vector<32x16xf32>, vector<8x16xf32> -> vector<8x16xf32>
    %c0_8 = arith.constant 0 : index
    %c0_9 = arith.constant 0 : index
    %9 = vector.load %arg5[%c0_8, %c0_9] : memref<1x16xf32, #tpu.memory_space<vmem>>, vector<1x16xf32>
    %10 = vector.broadcast %9 : vector<1x16xf32> to vector<8x16xf32>
    %11 = arith.addf %8, %10 : vector<8x16xf32>
    %12 = tpu.iota {dimensions = array<i32: 1>} : vector<8x16xi32>
    %c8_i32 = arith.constant 8 : i32
    %13 = vector.broadcast %c8_i32 : i32 to vector<8x16xi32>
    %14 = arith.cmpi slt, %12, %13 : vector<8x16xi32>
    %15 = math.exp %11 : vector<8x16xf32>
    %16 = arith.select %14, %11, %15 : vector<8x16xi1>, vector<8x16xf32>
    %c0_10 = arith.constant 0 : index
    %c0_11 = arith.constant 0 : index
    %17 = vector.load %arg6[%c0_10, %c0_11] : memref<8x16xf32, #tpu.memory_space<vmem>>, vector<8x16xf32>
    tpu.vector_store %arg6[%c0_10, %c0_11], %16 {strides = array<i32>} : memref<8x16xf32, #tpu.memory_space<vmem>>, vector<8x16xf32>,
    return
  }
  func.func @transform_0(%arg0: i32) -> (i32, i32) {
    %c0_i32 = arith.constant 0 : i32
    %c0_i32_0 = arith.constant 0 : i32
    return %arg0, %c0_i32 : i32, i32
  }
  func.func @transform_1(%arg0: i32) -> (i32, i32) {
    %c0_i32 = arith.constant 0 : i32
    %c0_i32_0 = arith.constant 0 : i32
    %c0_i32_1 = arith.constant 0 : i32
    return %c0_i32, %c0_i32_0 : i32, i32
  }
  func.func @transform_2(%arg0: i32) -> (i32, i32) {
    %c0_i32 = arith.constant 0 : i32
    %c0_i32_0 = arith.constant 0 : i32
    %c0_i32_1 = arith.constant 0 : i32
    return %c0_i32, %c0_i32_0 : i32, i32
  }
  func.func @transform_3(%arg0: i32) -> (i32, i32) {
    %c0_i32 = arith.constant 0 : i32
    %c0_i32_0 = arith.constant 0 : i32
    %c0_i32_1 = arith.constant 0 : i32
    return %c0_i32, %c0_i32_0 : i32, i32
  }
  func.func @transform_4(%arg0: i32) -> (i32, i32) {
    %c0_i32 = arith.constant 0 : i32
    %c0_i32_0 = arith.constant 0 : i32
    %c0_i32_1 = arith.constant 0 : i32
    return %c0_i32, %c0_i32_0 : i32, i32
  }
  func.func @transform_5(%arg0: i32) -> (i32, i32) {
    %c0_i32 = arith.constant 0 : i32
    %c0_i32_0 = arith.constant 0 : i32
    return %arg0, %c0_i32 : i32, i32
  }
}

</mosaic_0001>

<llo_original>
// kernel: tpu_custom_call.1
$region0: #{tpu_custom_call.1}
  #allocation0 [shape = 'u32[]', space=smem, size = 0x4, offset = 0x4, fixed_abs, tag = 'smem constant byte address 0x4 - core index']
  #allocation1 [shape = 'u32[144,128]{1,0:T(1,128)}', space=vmem, size = 0x12000, scoped, tag = 'internal scratch']
  %s0 = inlined_call_operand.vmem [shape: f32[8,128], index: 0, kind: input, shape index: {}]
  %s1 = inlined_call_operand.vmem [shape: f32[128,32], index: 1, kind: input, shape index: {}]
  %s2 = inlined_call_operand.vmem [shape: f32[1,32], index: 2, kind: input, shape index: {}]
  %s3 = inlined_call_operand.vmem [shape: f32[32,16], index: 3, kind: input, shape index: {}]
  %s4 = inlined_call_operand.vmem [shape: f32[1,16], index: 4, kind: input, shape index: {}]
  %s5 = inlined_call_operand.hbm [shape: f32[8,16], index: 5, kind: output, shape index: {}]
  %s6 = sld [smem:[#allocation0]]
  $region30: #{tpu_custom_call.1} parent=0
    _
  %s8 = ssub.s32 1, %s6
  %s9 = scalar_select 0, %s8, %s6
  $region1: #{tpu_custom_call.1} parent=0
    #allocation2 [shape = 'u8[4096]{0}', space=vmem, size = 0x1000, scoped, tag = 'output window, operand 0, single buffered']
    #allocation3 [shape = 's32[1]{0}', space=sflag, size = 0x4, scoped, tag = 'scoped memory for tpu_custom_call.1']
    %10 = vsyncpa [#allocation3], 0
    // Predicated region
    $region2: #{tpu_custom_call.1} parent=1 // pred_check
      _
    $region3: #{tpu_custom_call.1} parent=1 // pred_check_branch
      %12 = sbr.rel (0) target = $region5
    $region4: #{tpu_custom_call.1} parent=1 // pred_region
      _
    $region5: #{tpu_custom_call.1} parent=1 // pred_fallthru
      _
    // Predicated region
    $region6: #{tpu_custom_call.1} parent=1 // pred_check
      _
    $region7: #{tpu_custom_call.1} parent=1 // pred_check_branch
      %14 = sbr.rel (0) target = $region9
    $region8: #{tpu_custom_call.1} parent=1 // pred_region
      _
    $region9: #{tpu_custom_call.1} parent=1 // pred_fallthru
      _
    // Predicated region
    $region10: #{tpu_custom_call.1} parent=1 // pred_check
      _
    $region11: #{tpu_custom_call.1} parent=1 // pred_check_branch
      %16 = sbr.rel (0) target = $region13
    $region12: #{tpu_custom_call.1} parent=1 // pred_region
      _
    $region13: #{tpu_custom_call.1} parent=1 // pred_fallthru
      _
    // Predicated region
    $region14: #{tpu_custom_call.1} parent=1 // pred_check
      _
    $region15: #{tpu_custom_call.1} parent=1 // pred_check_branch
      %18 = sbr.rel (0) target = $region17
    $region16: #{tpu_custom_call.1} parent=1 // pred_region
      _
    $region17: #{tpu_custom_call.1} parent=1 // pred_fallthru
      _
    // Predicated region
    $region18: #{tpu_custom_call.1} parent=1 // pred_check
      _
    $region19: #{tpu_custom_call.1} parent=1 // pred_check_branch
      %20 = sbr.rel (0) target = $region21
    $region20: #{tpu_custom_call.1} parent=1 // pred_region
      _
    $region21: #{tpu_custom_call.1} parent=1 // pred_fallthru
      _
    %v21 = vld [vmem:[%s0] sm:$0xff]
    %v22 = vld [vmem:[%s1] sm:$0xff]
    %v23 = vld [vmem:[%s1 + $0x8] sm:$0xff]
    %v24 = vld [vmem:[%s1 + $0x10] sm:$0xff]
    %v25 = vld [vmem:[%s1 + $0x18] sm:$0xff]
    %v26 = vld [vmem:[%s1 + $0x20] sm:$0xff]
    %v27 = vld [vmem:[%s1 + $0x28] sm:$0xff]
    %v28 = vld [vmem:[%s1 + $0x30] sm:$0xff]
    %v29 = vld [vmem:[%s1 + $0x38] sm:$0xff]
    %v30 = vld [vmem:[%s1 + $0x40] sm:$0xff]
    %v31 = vld [vmem:[%s1 + $0x48] sm:$0xff]
    %v32 = vld [vmem:[%s1 + $0x50] sm:$0xff]
    %v33 = vld [vmem:[%s1 + $0x58] sm:$0xff]
    %v34 = vld [vmem:[%s1 + $0x60] sm:$0xff]
    %v35 = vld [vmem:[%s1 + $0x68] sm:$0xff]
    %v36 = vld [vmem:[%s1 + $0x70] sm:$0xff]
    %v37 = vld [vmem:[%s1 + $0x78] sm:$0xff]
    %v38 = vld [vmem:[%s2] sm:$0x1]
    %v40 = vlaneseq
    %v41 = vshrl.u32 %v40, 7
    %v42 = vsub.s32 0, %v41
    %v43 = vrot.slane %v38, %v42
    %45 = vmatprep.subr.mxu0 0.0
    %46 = vmatpush1.msra.mxu0 %v22
    %47 = vmatprep.subr.mxu0 0.0
    %48 = vmatpush1.msra.mxu0 %v23
    %49 = vmatprep.subr.mxu0 0.0
    %50 = vmatpush1.msra.mxu0 %v24
    %51 = vmatprep.subr.mxu0 0.0
    %52 = vmatpush1.msra.mxu0 %v25
    %53 = vmatprep.subr.mxu0 0.0
    %54 = vmatpush1.msra.mxu0 %v26
    %55 = vmatprep.subr.mxu0 0.0
    %56 = vmatpush1.msra.mxu0 %v27
    %57 = vmatprep.subr.mxu0 0.0
    %58 = vmatpush1.msra.mxu0 %v28
    %59 = vmatprep.subr.mxu0 0.0
    %60 = vmatpush1.msra.mxu0 %v29
    %61 = vmatprep.subr.mxu0 0.0
    %62 = vmatpush1.msra.mxu0 %v30
    %63 = vmatprep.subr.mxu0 0.0
    %64 = vmatpush1.msra.mxu0 %v31
    %65 = vmatprep.subr.mxu0 0.0
    %66 = vmatpush1.msra.mxu0 %v32
    %67 = vmatprep.subr.mxu0 0.0
    %68 = vmatpush1.msra.mxu0 %v33
    %69 = vmatprep.subr.mxu0 0.0
    %70 = vmatpush1.msra.mxu0 %v34
    %71 = vmatprep.subr.mxu0 0.0
    %72 = vmatpush1.msra.mxu0 %v35
    %73 = vmatprep.subr.mxu0 0.0
    %74 = vmatpush1.msra.mxu0 %v36
    %75 = vmatprep.subr.mxu0 0.0
    %76 = vmatpush1.msra.mxu0 %v37
    %77 = vmatprep.subr.mxu0 0.0
    %78 = vmatpush1.msra.mxu0 0.0
    %79 = vmatprep.subr.mxu0 0.0
    %80 = vmatpush1.msra.mxu0 0.0
    %81 = vmatprep.subr.mxu0 0.0
    %82 = vmatpush1.msra.mxu0 0.0
    %83 = vmatprep.subr.mxu0 0.0
    %84 = vmatpush1.msra.mxu0 0.0
    %85 = vmatprep.subr.mxu0 0.0
    %86 = vmatpush1.msra.mxu0 0.0
    %87 = vmatprep.subr.mxu0 0.0
    %88 = vmatpush1.msra.mxu0 0.0
    %89 = vmatprep.subr.mxu0 0.0
    %90 = vmatpush1.msra.mxu0 0.0
    %91 = vmatprep.subr.mxu0 0.0
    %92 = vmatpush1.msra.mxu0 0.0
    %93 = vmatprep.subr.mxu0 0.0
    %94 = vmatpush1.msra.mxu0 0.0
    %95 = vmatprep.subr.mxu0 0.0
    %96 = vmatpush1.msra.mxu0 0.0
    %97 = vmatprep.subr.mxu0 0.0
    %98 = vmatpush1.msra.mxu0 0.0
    %99 = vmatprep.subr.mxu0 0.0
    %100 = vmatpush1.msra.mxu0 0.0
    %101 = vmatprep.subr.mxu0 0.0
    %102 = vmatpush1.msra.mxu0 0.0
    %103 = vmatprep.subr.mxu0 0.0
    %104 = vmatpush1.msra.mxu0 0.0
    %105 = vmatprep.subr.mxu0 0.0
    %106 = vmatpush1.msra.mxu0 0.0
    %107 = vmatprep.subr.mxu0 0.0
    %108 = vmatpush1.msra.mxu0 0.0
    %109 = vmatprep.mubr.f32.mxu0 0.0
    %110 = vmatmul.mubr.f32.gmra.mrb[0].mxu0 %v21
    %v111 = vpop.f32.mrb[0].mxu0
    %v112 = vadd.f32 %v43, %v111
    %v113 = vpop.f32.mrb[0].mxu0
    %114 = vdwg.mxu0
    %v115 = vtanh.pop %v112
    %v116 = vld [vmem:[%s3] sm:$0xff]
    %v117 = vld [vmem:[%s3 + $0x8] sm:$0xff]
    %v118 = vld [vmem:[%s3 + $0x10] sm:$0xff]
    %v119 = vld [vmem:[%s3 + $0x18] sm:$0xff]
    %v120 = vld [vmem:[%s4] sm:$0x1]
    %v122 = vlaneseq
    %v123 = vshrl.u32 %v122, 7
    %v124 = vsub.s32 0, %v123
    %v125 = vrot.slane %v120, %v124
    %vm127 = vcmask 261120
    %v129 = vsel %vm127, %v115, 0
    %131 = vmatprep.subr.mxu0 0.0
    %132 = vmatpush1.msra.mxu0 %v116
    %133 = vmatprep.subr.mxu0 0.0
    %134 = vmatpush1.msra.mxu0 %v117
    %135 = vmatprep.subr.mxu0 0.0
    %136 = vmatpush1.msra.mxu0 %v118
    %137 = vmatprep.subr.mxu0 0.0
    %138 = vmatpush1.msra.mxu0 %v119
    %139 = vmatprep.subr.mxu0 0.0
    %140 = vmatpush1.msra.mxu0 0.0
    %141 = vmatprep.subr.mxu0 0.0
    %142 = vmatpush1.msra.mxu0 0.0
    %143 = vmatprep.subr.mxu0 0.0
    %144 = vmatpush1.msra.mxu0 0.0
    %145 = vmatprep.subr.mxu0 0.0
    %146 = vmatpush1.msra.mxu0 0.0
    %147 = vmatprep.subr.mxu0 0.0
    %148 = vmatpush1.msra.mxu0 0.0
    %149 = vmatprep.subr.mxu0 0.0
    %150 = vmatpush1.msra.mxu0 0.0
    %151 = vmatprep.subr.mxu0 0.0
    %152 = vmatpush1.msra.mxu0 0.0
    %153 = vmatprep.subr.mxu0 0.0
    %154 = vmatpush1.msra.mxu0 0.0
    %155 = vmatprep.subr.mxu0 0.0
    %156 = vmatpush1.msra.mxu0 0.0
    %157 = vmatprep.subr.mxu0 0.0
    %158 = vmatpush1.msra.mxu0 0.0
    %159 = vmatprep.subr.mxu0 0.0
    %160 = vmatpush1.msra.mxu0 0.0
    %161 = vmatprep.subr.mxu0 0.0
    %162 = vmatpush1.msra.mxu0 0.0
    %163 = vmatprep.subr.mxu0 0.0
    %164 = vmatpush1.msra.mxu0 0.0
    %165 = vmatprep.subr.mxu0 0.0
    %166 = vmatpush1.msra.mxu0 0.0
    %167 = vmatprep.subr.mxu0 0.0
    %168 = vmatpush1.msra.mxu0 0.0
    %169 = vmatprep.subr.mxu0 0.0
    %170 = vmatpush1.msra.mxu0 0.0
    %171 = vmatprep.subr.mxu0 0.0
    %172 = vmatpush1.msra.mxu0 0.0
    %173 = vmatprep.subr.mxu0 0.0
    %174 = vmatpush1.msra.mxu0 0.0
    %175 = vmatprep.subr.mxu0 0.0
    %176 = vmatpush1.msra.mxu0 0.0
    %177 = vmatprep.subr.mxu0 0.0
    %178 = vmatpush1.msra.mxu0 0.0
    %179 = vmatprep.subr.mxu0 0.0
    %180 = vmatpush1.msra.mxu0 0.0
    %181 = vmatprep.subr.mxu0 0.0
    %182 = vmatpush1.msra.mxu0 0.0
    %183 = vmatprep.subr.mxu0 0.0
    %184 = vmatpush1.msra.mxu0 0.0
    %185 = vmatprep.subr.mxu0 0.0
    %186 = vmatpush1.msra.mxu0 0.0
    %187 = vmatprep.subr.mxu0 0.0
    %188 = vmatpush1.msra.mxu0 0.0
    %189 = vmatprep.subr.mxu0 0.0
    %190 = vmatpush1.msra.mxu0 0.0
    %191 = vmatprep.subr.mxu0 0.0
    %192 = vmatpush1.msra.mxu0 0.0
    %193 = vmatprep.subr.mxu0 0.0
    %194 = vmatpush1.msra.mxu0 0.0
    %195 = vmatprep.mubr.f32.mxu0 0.0
    %196 = vmatmul.mubr.f32.gmra.mrb[0].mxu0 %v129
    %v197 = vpop.f32.mrb[0].mxu0
    %v198 = vadd.f32 %v125, %v197
    %v199 = vpop.f32.mrb[0].mxu0
    %200 = vdwg.mxu0
    %v201 = vlaneseq
    %v202 = vand.u32 %v201, 127
    %vm203 = vcmp.lt.s32.totalorder %v202, 8
    %v204 = vmul.f32 %v198, 1.442695
    %v205 = vpow.pop %v204
    %v206 = vsel %vm203, %v198, %v205
    %vm207 = vcmask 130048
    %208 = vst.msk [vmem:[#allocation2] sm:$0xff] %vm207, %v206
    // Predicated region
    $region22: #{tpu_custom_call.1} parent=1 // pred_check
      _
    $region23: #{tpu_custom_call.1} parent=1 // pred_check_branch
      %210 = sbr.rel (0) target = $region25
    $region24: #{tpu_custom_call.1} parent=1 // pred_region
      %s212 = ssub.s32 128, 128
      %213 = vsyncadd [#allocation3], %s212
      %s215 = sshll.u32 [#allocation2], 4
      %s216 = int_to_ptr.vmem [resolvable:$true] %s215
      %218 = dma.vmem_to_hbm [thread:$0]  %s216, 128, %s5, [#allocation3]
    $region25: #{tpu_custom_call.1} parent=1 // pred_fallthru
      _
    // Predicated region
    $region26: #{tpu_custom_call.1} parent=1 // pred_check
      _
    $region27: #{tpu_custom_call.1} parent=1 // pred_check_branch
      %220 = sbr.rel (0) target = $region29
    $region28: #{tpu_custom_call.1} parent=1 // pred_region
      %221 = dma.done [#allocation3], 128
    $region29: #{tpu_custom_call.1} parent=1 // pred_fallthru
      _
    %222 = vsyncpa [#allocation3], 1

</llo_original>
